<compile_context>
chip_gen: v6e
topology: v6e:2x2x1
jax: 0.10.0
libtpu: 0.0.40
codegen_flags: <defaults>
</compile_context>

<pallas_src>
import functools

import jax
import jax.numpy as jnp
from jax.experimental import pallas as pl
from jax.experimental.pallas import tpu as pltpu


def block_kernel(x_ref, w1_ref, b1_ref, w2_ref, b2_ref,
                 w3_ref, b3_ref, w4_ref, b4_ref, o_ref, *, compute_dtype):
    """Fused Block forward on one (C, tile_n) pixel slab.

    Each 1x1 conv == matmul over channels: h <- relu(W @ h + b) with
    W:(out,in), h:(in, tile_n), b:(out,1). The pixel axis is the lane axis so
    all dots have a lane-dense N dimension and stores are unmasked.
    Dots may run in bf16 (v6e/v7x) via `compute_dtype`; accumulation, bias add
    and ReLU stay in f32 (v5e has no bf16 VPU).
    """
    h = x_ref[...]
    for w_ref, b_ref in ((w1_ref, b1_ref), (w2_ref, b2_ref),
                         (w3_ref, b3_ref), (w4_ref, b4_ref)):
        acc = jnp.dot(w_ref[...].astype(compute_dtype),
                      h.astype(compute_dtype),
                      preferred_element_type=jnp.float32)
        h = jnp.maximum(acc + b_ref[...], 0.0)
    o_ref[...] = h.astype(o_ref.dtype)


def _round_up(x, m):
    return pl.cdiv(x, m) * m


def block_forward(x_nchw, params, *, tile_n_max=2048,
                  vmem_budget_bytes=48 * 1024 * 1024,
                  compute_dtype=jnp.float32):
    """x_nchw: (B, C_in, H, W) float32. Returns (B, hidden, H, W)."""
    w1, b1, w2, b2, w3, b3, w4, b4 = params
    B, C_in, H, W = x_nchw.shape
    hidden = w1.shape[0]
    HW = H * W

    # ---- pick a lane-dense pixel tile that fits the VMEM budget ------------
    tile_n = min(tile_n_max, _round_up(HW, 128))
    tile_n = max(128, (tile_n // 128) * 128)

    def vmem_bytes(tn):
        # double-buffered in/out tiles + (double-buffered) weights/biases
        # + live f32 intermediates inside the kernel (rough upper bound).
        in_t = 2 * max(C_in, 8) * tn * 4
        out_t = 2 * hidden * tn * 4
        wgt = 2 * 4 * hidden * max(hidden, 128) * 4
        live = 3 * hidden * tn * 4
        return in_t + out_t + wgt + live

    while tile_n > 128 and vmem_bytes(tile_n) > vmem_budget_bytes:
        tile_n -= 128

    HW_pad = _round_up(HW, tile_n)

    # NCHW -> (B, C, H*W): a pure reshape, no host-side transpose pass.
    x3d = x_nchw.reshape(B, C_in, HW)
    if HW_pad != HW:
        x3d = jnp.pad(x3d, ((0, 0), (0, 0), (0, HW_pad - HW)))

    # Grid: (batch, pixel tiles) -- both parallel (megacore-shardable on v7x).
    grid = (B, HW_pad // tile_n)

    def pix_spec(c):
        # Batch dim squeezed out of the kernel view; kernel sees (c, tile_n).
        return pl.BlockSpec((None, c, tile_n), lambda b, j: (b, 0, j))

    def full_spec(r, c):
        # Full-array weight/bias block, constant across the grid.
        # (Single-buffering via pl.Buffered(1) would save a little VMEM but is
        # negligible at hidden=32, so we keep the default pipelining.)
        return pl.BlockSpec((r, c), lambda b, j: (0, 0))

    flops = 2 * B * HW * (C_in * hidden + 3 * hidden * hidden)
    bytes_accessed = 4 * (B * C_in * HW + B * hidden * HW
                          + hidden * C_in + 3 * hidden * hidden + 4 * hidden)

    out3d = pl.pallas_call(
        functools.partial(block_kernel, compute_dtype=compute_dtype),
        out_shape=jax.ShapeDtypeStruct((B, hidden, HW_pad), jnp.float32),
        grid_spec=pltpu.PrefetchScalarGridSpec(
            num_scalar_prefetch=0,
            grid=grid,
            in_specs=[
                pix_spec(C_in),
                full_spec(hidden, C_in), full_spec(hidden, 1),
                full_spec(hidden, hidden), full_spec(hidden, 1),
                full_spec(hidden, hidden), full_spec(hidden, 1),
                full_spec(hidden, hidden), full_spec(hidden, 1),
            ],
            out_specs=pix_spec(hidden),
        ),
        compiler_params=pltpu.CompilerParams(
            dimension_semantics=("parallel", "parallel"),
            vmem_limit_bytes=int(min(max(vmem_bytes(tile_n) + (8 << 20),
                                         32 << 20), 48 << 20)),
        ),
        cost_estimate=pl.CostEstimate(
            flops=int(flops),
            transcendentals=0,
            bytes_accessed=int(bytes_accessed)),
    )(x3d, w1, b1, w2, b2, w3, b3, w4, b4)

    out3d = out3d[:, :, :HW]           # drop padded pixel columns
    return out3d.reshape(B, hidden, H, W)   # pure reshape back to NCHW


def init_params(key, in_channels, hidden_channels):
    """Deterministic synthetic init mimicking Conv2d(k=1) weight/bias shapes.

    PyTorch Conv2d weight is (out_c, in_c, 1, 1); we store it squeezed as
    (out_c, in_c) and the bias as (out_c, 1) to match the (channels, pixels)
    kernel layout."""
    keys = jax.random.split(key, 8)
    dims = ([(hidden_channels, in_channels)]
            + [(hidden_channels, hidden_channels)] * 3)
    params = []
    for li, (cout, cin) in enumerate(dims):
        bound = 1.0 / jnp.sqrt(jnp.float32(cin))
        w = jax.random.uniform(keys[2 * li], (cout, cin),
                               minval=-bound, maxval=bound, dtype=jnp.float32)
        b = jax.random.uniform(keys[2 * li + 1], (cout, 1),
                               minval=-bound, maxval=bound, dtype=jnp.float32)
        params.extend([w, b])
    return tuple(params)


def reference_forward(x_nchw, params):
    """Plain-JAX reference (per-pixel channel matmuls) for correctness check."""
    w1, b1, w2, b2, w3, b3, w4, b4 = params
    B, C, H, W = x_nchw.shape
    h = x_nchw.reshape(B, C, H * W)
    for w, b in ((w1, b1), (w2, b2), (w3, b3), (w4, b4)):
        h = jnp.maximum(jnp.einsum('oc,bcn->bon', w, h) + b[None], 0.0)
    return h.reshape(B, -1, H, W)


if __name__ == "__main__":
    key = jax.random.PRNGKey(0)
    k_x, k_p = jax.random.split(key)

    # Small shapes consistent with the module: NCHW input to a 1x1-conv stack.
    B, C_in, H, W = 2, 4, 16, 16
    hidden = 32
    # TODO(synk): theta_b_fc / theta_f_fc and the backcast/forecast linspaces
    # are defined in Block.__init__ but never used in Block.forward, so they
    # are intentionally omitted.

    x = jax.random.normal(k_x, (B, C_in, H, W), dtype=jnp.float32)
    params = init_params(k_p, C_in, hidden)

    out = jax.block_until_ready(block_forward(x, params))
    ref = reference_forward(x, params)

    assert out.shape == (B, hidden, H, W)
    assert jnp.allclose(out, ref, atol=2e-5, rtol=2e-5), \
        float(jnp.max(jnp.abs(out - ref)))

    print("KERNEL_OK")
</pallas_src>

<mosaic_0001>
module attributes {stable_mosaic.version = 11 : i64} {
  func.func @block_kernel(%arg0: i32, %arg1: i32, %arg2: memref<1x4x256xf32, #tpu.memory_space<vmem>>, %arg3: memref<32x4xf32, #tpu.memory_space<vmem>>, %arg4: memref<32x1xf32, #tpu.memory_space<vmem>>, %arg5: memref<32x32xf32, #tpu.memory_space<vmem>>, %arg6: memref<32x1xf32, #tpu.memory_space<vmem>>, %arg7: memref<32x32xf32, #tpu.memory_space<vmem>>, %arg8: memref<32x1xf32, #tpu.memory_space<vmem>>, %arg9: memref<32x32xf32, #tpu.memory_space<vmem>>, %arg10: memref<32x1xf32, #tpu.memory_space<vmem>>, %arg11: memref<1x32x256xf32, #tpu.memory_space<vmem>>) attributes {dimension_semantics = [#tpu.dimension_semantics<parallel>, #tpu.dimension_semantics<parallel>], iteration_bounds = array<i64: 2, 1>, scalar_prefetch = 0 : i64, scratch_operands = 0 : i64, tpu.core_type = #tpu.core_type<tc>, window_params = [{transform_indices = @transform_0, window_bounds = array<i64: 1, 4, 256>}, {pipeline_mode = #tpu.pipeline_mode<synchronous>, transform_indices = @transform_1, window_bounds = array<i64: 32, 4>}, {pipeline_mode = #tpu.pipeline_mode<synchronous>, transform_indices = @transform_2, window_bounds = array<i64: 32, 1>}, {pipeline_mode = #tpu.pipeline_mode<synchronous>, transform_indices = @transform_3, window_bounds = array<i64: 32, 32>}, {pipeline_mode = #tpu.pipeline_mode<synchronous>, transform_indices = @transform_4, window_bounds = array<i64: 32, 1>}, {pipeline_mode = #tpu.pipeline_mode<synchronous>, transform_indices = @transform_5, window_bounds = array<i64: 32, 32>}, {pipeline_mode = #tpu.pipeline_mode<synchronous>, transform_indices = @transform_6, window_bounds = array<i64: 32, 1>}, {pipeline_mode = #tpu.pipeline_mode<synchronous>, transform_indices = @transform_7, window_bounds = array<i64: 32, 32>}, {pipeline_mode = #tpu.pipeline_mode<synchronous>, transform_indices = @transform_8, window_bounds = array<i64: 32, 1>}, {transform_indices = @transform_9, window_bounds = array<i64: 1, 32, 256>}]} {
    %c0 = arith.constant 0 : index
    %c0_0 = arith.constant 0 : index
    %c0_1 = arith.constant 0 : index
    %0 = vector.load %arg2[%c0, %c0_0, %c0_1] : memref<1x4x256xf32, #tpu.memory_space<vmem>>, vector<1x4x256xf32>
    %1 = vector.shape_cast %0 : vector<1x4x256xf32> to vector<4x256xf32>
    %c0_2 = arith.constant 0 : index
    %c0_3 = arith.constant 0 : index
    %2 = vector.load %arg3[%c0_2, %c0_3] : memref<32x4xf32, #tpu.memory_space<vmem>>, vector<32x4xf32>
    %cst = arith.constant dense<0.000000e+00> : vector<32x256xf32>
    %3 = tpu.matmul %2, %1, %cst {dimension_numbers = #tpu.dot_dimension_numbers<[1], [0], [0], [1], [0, 0, 1, 1], [], []>} : vector<32x4xf32>, vector<4x256xf32>, vector<32x256xf32> -> vector<32x256xf32>
    %c0_4 = arith.constant 0 : index
    %c0_5 = arith.constant 0 : index
    %4 = vector.load %arg4[%c0_4, %c0_5] : memref<32x1xf32, #tpu.memory_space<vmem>>, vector<32x1xf32>
    %5 = vector.broadcast %4 : vector<32x1xf32> to vector<32x256xf32>
    %6 = arith.addf %3, %5 : vector<32x256xf32>
    %cst_6 = arith.constant 0.000000e+00 : f32
    %7 = vector.broadcast %cst_6 : f32 to vector<32x256xf32>
    %8 = arith.maximumf %6, %7 : vector<32x256xf32>
    %c0_7 = arith.constant 0 : index
    %c0_8 = arith.constant 0 : index
    %9 = vector.load %arg5[%c0_7, %c0_8] : memref<32x32xf32, #tpu.memory_space<vmem>>, vector<32x32xf32>
    %cst_9 = arith.constant dense<0.000000e+00> : vector<32x256xf32>
    %10 = tpu.matmul %9, %8, %cst_9 {dimension_numbers = #tpu.dot_dimension_numbers<[1], [0], [0], [1], [0, 0, 1, 1], [], []>} : vector<32x32xf32>, vector<32x256xf32>, vector<32x256xf32> -> vector<32x256xf32>
    %c0_10 = arith.constant 0 : index
    %c0_11 = arith.constant 0 : index
    %11 = vector.load %arg6[%c0_10, %c0_11] : memref<32x1xf32, #tpu.memory_space<vmem>>, vector<32x1xf32>
    %12 = vector.broadcast %11 : vector<32x1xf32> to vector<32x256xf32>
    %13 = arith.addf %10, %12 : vector<32x256xf32>
    %cst_12 = arith.constant 0.000000e+00 : f32
    %14 = vector.broadcast %cst_12 : f32 to vector<32x256xf32>
    %15 = arith.maximumf %13, %14 : vector<32x256xf32>
    %c0_13 = arith.constant 0 : index
    %c0_14 = arith.constant 0 : index
    %16 = vector.load %arg7[%c0_13, %c0_14] : memref<32x32xf32, #tpu.memory_space<vmem>>, vector<32x32xf32>
    %cst_15 = arith.constant dense<0.000000e+00> : vector<32x256xf32>
    %17 = tpu.matmul %16, %15, %cst_15 {dimension_numbers = #tpu.dot_dimension_numbers<[1], [0], [0], [1], [0, 0, 1, 1], [], []>} : vector<32x32xf32>, vector<32x256xf32>, vector<32x256xf32> -> vector<32x256xf32>
    %c0_16 = arith.constant 0 : index
    %c0_17 = arith.constant 0 : index
    %18 = vector.load %arg8[%c0_16, %c0_17] : memref<32x1xf32, #tpu.memory_space<vmem>>, vector<32x1xf32>
    %19 = vector.broadcast %18 : vector<32x1xf32> to vector<32x256xf32>
    %20 = arith.addf %17, %19 : vector<32x256xf32>
    %cst_18 = arith.constant 0.000000e+00 : f32
    %21 = vector.broadcast %cst_18 : f32 to vector<32x256xf32>
    %22 = arith.maximumf %20, %21 : vector<32x256xf32>
    %c0_19 = arith.constant 0 : index
    %c0_20 = arith.constant 0 : index
    %23 = vector.load %arg9[%c0_19, %c0_20] : memref<32x32xf32, #tpu.memory_space<vmem>>, vector<32x32xf32>
    %cst_21 = arith.constant dense<0.000000e+00> : vector<32x256xf32>
    %24 = tpu.matmul %23, %22, %cst_21 {dimension_numbers = #tpu.dot_dimension_numbers<[1], [0], [0], [1], [0, 0, 1, 1], [], []>} : vector<32x32xf32>, vector<32x256xf32>, vector<32x256xf32> -> vector<32x256xf32>
    %c0_22 = arith.constant 0 : index
    %c0_23 = arith.constant 0 : index
    %25 = vector.load %arg10[%c0_22, %c0_23] : memref<32x1xf32, #tpu.memory_space<vmem>>, vector<32x1xf32>
    %26 = vector.broadcast %25 : vector<32x1xf32> to vector<32x256xf32>
    %27 = arith.addf %24, %26 : vector<32x256xf32>
    %cst_24 = arith.constant 0.000000e+00 : f32
    %28 = vector.broadcast %cst_24 : f32 to vector<32x256xf32>
    %29 = arith.maximumf %27, %28 : vector<32x256xf32>
    %c0_25 = arith.constant 0 : index
    %c0_26 = arith.constant 0 : index
    %c0_27 = arith.constant 0 : index
    %30 = vector.load %arg11[%c0_25, %c0_26, %c0_27] : memref<1x32x256xf32, #tpu.memory_space<vmem>>, vector<1x32x256xf32>
    %31 = vector.shape_cast %30 : vector<1x32x256xf32> to vector<32x256xf32>
    %32 = vector.shape_cast %29 : vector<32x256xf32> to vector<1x32x256xf32>
    tpu.vector_store %arg11[%c0_25, %c0_26, %c0_27], %32 {strides = array<i32>} : memref<1x32x256xf32, #tpu.memory_space<vmem>>, vector<1x32x256xf32>,
    return
  }
  func.func @transform_0(%arg0: i32, %arg1: i32) -> (i32, i32, i32) {
    %c0_i32 = arith.constant 0 : i32
    %c0_i32_0 = arith.constant 0 : i32
    return %arg0, %c0_i32, %arg1 : i32, i32, i32
  }
  func.func @transform_1(%arg0: i32, %arg1: i32) -> (i32, i32) {
    %c0_i32 = arith.constant 0 : i32
    %c0_i32_0 = arith.constant 0 : i32
    %c0_i32_1 = arith.constant 0 : i32
    return %c0_i32, %c0_i32_0 : i32, i32
  }
  func.func @transform_2(%arg0: i32, %arg1: i32) -> (i32, i32) {
    %c0_i32 = arith.constant 0 : i32
    %c0_i32_0 = arith.constant 0 : i32
    %c0_i32_1 = arith.constant 0 : i32
    return %c0_i32, %c0_i32_0 : i32, i32
  }
  func.func @transform_3(%arg0: i32, %arg1: i32) -> (i32, i32) {
    %c0_i32 = arith.constant 0 : i32
    %c0_i32_0 = arith.constant 0 : i32
    %c0_i32_1 = arith.constant 0 : i32
    return %c0_i32, %c0_i32_0 : i32, i32
  }
  func.func @transform_4(%arg0: i32, %arg1: i32) -> (i32, i32) {
    %c0_i32 = arith.constant 0 : i32
    %c0_i32_0 = arith.constant 0 : i32
    %c0_i32_1 = arith.constant 0 : i32
    return %c0_i32, %c0_i32_0 : i32, i32
  }
  func.func @transform_5(%arg0: i32, %arg1: i32) -> (i32, i32) {
    %c0_i32 = arith.constant 0 : i32
    %c0_i32_0 = arith.constant 0 : i32
    %c0_i32_1 = arith.constant 0 : i32
    return %c0_i32, %c0_i32_0 : i32, i32
  }
  func.func @transform_6(%arg0: i32, %arg1: i32) -> (i32, i32) {
    %c0_i32 = arith.constant 0 : i32
    %c0_i32_0 = arith.constant 0 : i32
    %c0_i32_1 = arith.constant 0 : i32
    return %c0_i32, %c0_i32_0 : i32, i32
  }
  func.func @transform_7(%arg0: i32, %arg1: i32) -> (i32, i32) {
    %c0_i32 = arith.constant 0 : i32
    %c0_i32_0 = arith.constant 0 : i32
    %c0_i32_1 = arith.constant 0 : i32
    return %c0_i32, %c0_i32_0 : i32, i32
  }
  func.func @transform_8(%arg0: i32, %arg1: i32) -> (i32, i32) {
    %c0_i32 = arith.constant 0 : i32
    %c0_i32_0 = arith.constant 0 : i32
    %c0_i32_1 = arith.constant 0 : i32
    return %c0_i32, %c0_i32_0 : i32, i32
  }
  func.func @transform_9(%arg0: i32, %arg1: i32) -> (i32, i32, i32) {
    %c0_i32 = arith.constant 0 : i32
    %c0_i32_0 = arith.constant 0 : i32
    return %arg0, %c0_i32, %arg1 : i32, i32, i32
  }
}

</mosaic_0001>

<llo_original>
// kernel: tpu_custom_call.1
$region0: #{tpu_custom_call.1}
  #allocation0 [shape = 'u32[]', space=smem, size = 0x4, offset = 0x4, fixed_abs, tag = 'smem constant byte address 0x4 - core index']
  #allocation1 [shape = 'u32[144,128]{1,0:T(1,128)}', space=vmem, size = 0x12000, scoped, tag = 'internal scratch']
  %s0 = inlined_call_operand.vmem [shape: f32[2,4,256], index: 0, kind: input, shape index: {}]
  %s1 = inlined_call_operand.vmem [shape: f32[32,4], index: 1, kind: input, shape index: {}]
  %s2 = inlined_call_operand.vmem [shape: f32[32,1], index: 2, kind: input, shape index: {}]
  %s3 = inlined_call_operand.vmem [shape: f32[32,32], index: 3, kind: input, shape index: {}]
  %s4 = inlined_call_operand.vmem [shape: f32[32,1], index: 4, kind: input, shape index: {}]
  %s5 = inlined_call_operand.vmem [shape: f32[32,32], index: 5, kind: input, shape index: {}]
  %s6 = inlined_call_operand.vmem [shape: f32[32,1], index: 6, kind: input, shape index: {}]
  %s7 = inlined_call_operand.vmem [shape: f32[32,32], index: 7, kind: input, shape index: {}]
  %s8 = inlined_call_operand.vmem [shape: f32[32,1], index: 8, kind: input, shape index: {}]
  %s9 = inlined_call_operand.hbm [shape: f32[2,32,256], index: 9, kind: output, shape index: {}]
  %s10 = sld [smem:[#allocation0]]
  $region69: #{tpu_custom_call.1} parent=0
    _
  %s12 = ssub.s32 1, %s10
  %s13 = scalar_select 0, %s12, %s10
  $region1: #{tpu_custom_call.1} parent=0
    #allocation2 [shape = 'u8[65536]{0}', space=vmem, size = 0x10000, scoped, tag = 'output window, operand 0']
    #allocation3 [shape = 's32[2]{0}', space=sflag, size = 0x8, scoped, tag = 'scoped memory for tpu_custom_call.1']
    %14 = vsyncpa [#allocation3], 0
    %s15 = scalar_lea.sflag [#allocation3], 1
    %16 = vsyncpa %s15, 0
    loop: start=0, step=1, limit=4
    $region2: #{tpu_custom_call.1} parent=1 // loop_pre_header
      _
    $region3: #{tpu_custom_call.1} parent=1 // loop_header
      %s18 = sphi 0, %s22
      %p19 = scmp.ge.s32.totalorder %s18, 4
      %s25 = sphi 0, %s37
      %s26 = sphi 0, %s33
      %s27 = sphi 0, %s25
      %s28 = sphi 0, %s26
      %s29 = sphi 0, %s27
      %s30 = sphi 0, %s28
      %s42 = sphi 0, %s44
      %s45 = sphi 0, %s42
      %s46 = sphi 0, %s45
      %s62 = sphi 0, %s46
      %s66 = sphi 0, %s66
      %s68 = sphi 0, %s66
      %s69 = sphi 0, %s68
      %s83 = sphi 0, %s69
      %s87 = sphi 0, %s87
      %s89 = sphi 0, %s87
      %s90 = sphi 0, %s89
      %s104 = sphi 0, %s90
      %s108 = sphi 0, %s108
      %s110 = sphi 0, %s108
      %s111 = sphi 0, %s110
      %s125 = sphi 0, %s111
      %s129 = sphi 0, %s129
      %s131 = sphi 0, %s129
      %s132 = sphi 0, %s131
      %s146 = sphi 0, %s132
      %s150 = sphi 0, %s150
      %s152 = sphi 0, %s150
      %s153 = sphi 0, %s152
      %s167 = sphi 0, %s153
      %s171 = sphi 0, %s171
      %s173 = sphi 0, %s171
      %s174 = sphi 0, %s173
      %s188 = sphi 0, %s174
      %s192 = sphi 0, %s192
      %s194 = sphi 0, %s192
      %s195 = sphi 0, %s194
      %s209 = sphi 0, %s195
      %s213 = sphi 0, %s213
      %s215 = sphi 0, %s213
      %s216 = sphi 0, %s215
      %s230 = sphi 0, %s216
      %s238 = sphi 0, %s240
      %s241 = sphi 0, %s238
      %s242 = sphi 0, %s241
      %s258 = sphi 0, %s242
    $region4: #{tpu_custom_call.1} parent=1 // loop_header_branch
      %21 = sbr.rel (%p19) target = $region8
    $region5: #{tpu_custom_call.1} parent=1 // loop_body
      %s23 = ssub.s32 %s18, 1
      %s24 = ssub.s32 %s18, 2
      %s31 = sadd.s32 1, %s26
      %p32 = scmp.ge.s32.totalorder %s31, 1
      %s33 = scalar_select %p32, 0, %s31
      %s34 = sadd.s32 1, %s25
      %s35 = scalar_select %p32, %s34, %s25
      %p36 = scmp.ge.s32.totalorder %s35, 2
      %s37 = scalar_select %p36, 0, %s35
      %s38 = ssub.s32 %s25, %s37
      %s39 = ssub.s32 %s26, %s33
      %s40 = sor.u32 %s38, %s39
      %p41 = scmp.eq.s32.totalorder %s40, 0
      %s43 = sadd.s32 %s42, 1
      %s44 = scalar_select %p41, %s42, %s43
      %p47 = pneg %p41
      %p48 = scmp.eq.s32.totalorder %s18, 1
      %p49 = por %p47, %p48
      %p50 = scmp.ne.s32.totalorder %s42, %s45
      %p51 = scmp.eq.s32.totalorder %s18, 0
      %p52 = por %p50, %p51
      %p53 = scmp.ne.s32.totalorder %s42, %s45
      %p54 = scmp.eq.s32.totalorder %s23, 1
      %p55 = por %p53, %p54
      %p56 = scmp.ne.s32.totalorder %s45, %s46
      %p57 = scmp.eq.s32.totalorder %s23, 0
      %p58 = por %p56, %p57
      %p59 = scmp.ne.s32.totalorder %s45, %s46
      %p60 = scmp.eq.s32.totalorder %s24, 1
      %p61 = por %p59, %p60
      %p63 = scmp.ne.s32.totalorder %s46, %s62
      %p64 = scmp.eq.s32.totalorder %s24, 0
      %p65 = por %p63, %p64
      %s67 = sadd.s32 %s66, 1
      %p70 = scmp.eq.s32.totalorder %s18, 1
      %p71 = scmp.ne.s32.totalorder %s66, %s68
      %p72 = scmp.eq.s32.totalorder %s18, 0
      %p73 = por %p71, %p72
      %p74 = scmp.ne.s32.totalorder %s66, %s68
      %p75 = scmp.eq.s32.totalorder %s23, 1
      %p76 = por %p74, %p75
      %p77 = scmp.ne.s32.totalorder %s68, %s69
      %p78 = scmp.eq.s32.totalorder %s23, 0
      %p79 = por %p77, %p78
      %p80 = scmp.ne.s32.totalorder %s68, %s69
      %p81 = scmp.eq.s32.totalorder %s24, 1
      %p82 = por %p80, %p81
      %p84 = scmp.ne.s32.totalorder %s69, %s83
      %p85 = scmp.eq.s32.totalorder %s24, 0
      %p86 = por %p84, %p85
      %s88 = sadd.s32 %s87, 1
      %p91 = scmp.eq.s32.totalorder %s18, 1
      %p92 = scmp.ne.s32.totalorder %s87, %s89
      %p93 = scmp.eq.s32.totalorder %s18, 0
      %p94 = por %p92, %p93
      %p95 = scmp.ne.s32.totalorder %s87, %s89
      %p96 = scmp.eq.s32.totalorder %s23, 1
      %p97 = por %p95, %p96
      %p98 = scmp.ne.s32.totalorder %s89, %s90
      %p99 = scmp.eq.s32.totalorder %s23, 0
      %p100 = por %p98, %p99
      %p101 = scmp.ne.s32.totalorder %s89, %s90
      %p102 = scmp.eq.s32.totalorder %s24, 1
      %p103 = por %p101, %p102
      %p105 = scmp.ne.s32.totalorder %s90, %s104
      %p106 = scmp.eq.s32.totalorder %s24, 0
      %p107 = por %p105, %p106
      %s109 = sadd.s32 %s108, 1
      %p112 = scmp.eq.s32.totalorder %s18, 1
      %p113 = scmp.ne.s32.totalorder %s108, %s110
      %p114 = scmp.eq.s32.totalorder %s18, 0
      %p115 = por %p113, %p114
      %p116 = scmp.ne.s32.totalorder %s108, %s110
      %p117 = scmp.eq.s32.totalorder %s23, 1
      %p118 = por %p116, %p117
      %p119 = scmp.ne.s32.totalorder %s110, %s111
      %p120 = scmp.eq.s32.totalorder %s23, 0
      %p121 = por %p119, %p120
      %p122 = scmp.ne.s32.totalorder %s110, %s111
      %p123 = scmp.eq.s32.totalorder %s24, 1
      %p124 = por %p122, %p123
      %p126 = scmp.ne.s32.totalorder %s111, %s125
      %p127 = scmp.eq.s32.totalorder %s24, 0
      %p128 = por %p126, %p127
      %s130 = sadd.s32 %s129, 1
      %p133 = scmp.eq.s32.totalorder %s18, 1
      %p134 = scmp.ne.s32.totalorder %s129, %s131
      %p135 = scmp.eq.s32.totalorder %s18, 0
      %p136 = por %p134, %p135
      %p137 = scmp.ne.s32.totalorder %s129, %s131
      %p138 = scmp.eq.s32.totalorder %s23, 1
      %p139 = por %p137, %p138
      %p140 = scmp.ne.s32.totalorder %s131, %s132
      %p141 = scmp.eq.s32.totalorder %s23, 0
      %p142 = por %p140, %p141
      %p143 = scmp.ne.s32.totalorder %s131, %s132
      %p144 = scmp.eq.s32.totalorder %s24, 1
      %p145 = por %p143, %p144
      %p147 = scmp.ne.s32.totalorder %s132, %s146
      %p148 = scmp.eq.s32.totalorder %s24, 0
      %p149 = por %p147, %p148
      %s151 = sadd.s32 %s150, 1
      %p154 = scmp.eq.s32.totalorder %s18, 1
      %p155 = scmp.ne.s32.totalorder %s150, %s152
      %p156 = scmp.eq.s32.totalorder %s18, 0
      %p157 = por %p155, %p156
      %p158 = scmp.ne.s32.totalorder %s150, %s152
      %p159 = scmp.eq.s32.totalorder %s23, 1
      %p160 = por %p158, %p159
      %p161 = scmp.ne.s32.totalorder %s152, %s153
      %p162 = scmp.eq.s32.totalorder %s23, 0
      %p163 = por %p161, %p162
      %p164 = scmp.ne.s32.totalorder %s152, %s153
      %p165 = scmp.eq.s32.totalorder %s24, 1
      %p166 = por %p164, %p165
      %p168 = scmp.ne.s32.totalorder %s153, %s167
      %p169 = scmp.eq.s32.totalorder %s24, 0
      %p170 = por %p168, %p169
      %s172 = sadd.s32 %s171, 1
      %p175 = scmp.eq.s32.totalorder %s18, 1
      %p176 = scmp.ne.s32.totalorder %s171, %s173
      %p177 = scmp.eq.s32.totalorder %s18, 0
      %p178 = por %p176, %p177
      %p179 = scmp.ne.s32.totalorder %s171, %s173
      %p180 = scmp.eq.s32.totalorder %s23, 1
      %p181 = por %p179, %p180
      %p182 = scmp.ne.s32.totalorder %s173, %s174
      %p183 = scmp.eq.s32.totalorder %s23, 0
      %p184 = por %p182, %p183
      %p185 = scmp.ne.s32.totalorder %s173, %s174
      %p186 = scmp.eq.s32.totalorder %s24, 1
      %p187 = por %p185, %p186
      %p189 = scmp.ne.s32.totalorder %s174, %s188
      %p190 = scmp.eq.s32.totalorder %s24, 0
      %p191 = por %p189, %p190
      %s193 = sadd.s32 %s192, 1
      %p196 = scmp.eq.s32.totalorder %s18, 1
      %p197 = scmp.ne.s32.totalorder %s192, %s194
      %p198 = scmp.eq.s32.totalorder %s18, 0
      %p199 = por %p197, %p198
      %p200 = scmp.ne.s32.totalorder %s192, %s194
      %p201 = scmp.eq.s32.totalorder %s23, 1
      %p202 = por %p200, %p201
      %p203 = scmp.ne.s32.totalorder %s194, %s195
      %p204 = scmp.eq.s32.totalorder %s23, 0
      %p205 = por %p203, %p204
      %p206 = scmp.ne.s32.totalorder %s194, %s195
      %p207 = scmp.eq.s32.totalorder %s24, 1
      %p208 = por %p206, %p207
      %p210 = scmp.ne.s32.totalorder %s195, %s209
      %p211 = scmp.eq.s32.totalorder %s24, 0
      %p212 = por %p210, %p211
      %s214 = sadd.s32 %s213, 1
      %p217 = scmp.eq.s32.totalorder %s18, 1
      %p218 = scmp.ne.s32.totalorder %s213, %s215
      %p219 = scmp.eq.s32.totalorder %s18, 0
      %p220 = por %p218, %p219
      %p221 = scmp.ne.s32.totalorder %s213, %s215
      %p222 = scmp.eq.s32.totalorder %s23, 1
      %p223 = por %p221, %p222
      %p224 = scmp.ne.s32.totalorder %s215, %s216
      %p225 = scmp.eq.s32.totalorder %s23, 0
      %p226 = por %p224, %p225
      %p227 = scmp.ne.s32.totalorder %s215, %s216
      %p228 = scmp.eq.s32.totalorder %s24, 1
      %p229 = por %p227, %p228
      %p231 = scmp.ne.s32.totalorder %s216, %s230
      %p232 = scmp.eq.s32.totalorder %s24, 0
      %p233 = por %p231, %p232
      %s234 = ssub.s32 %s25, %s37
      %s235 = ssub.s32 %s26, %s33
      %s236 = sor.u32 %s234, %s235
      %p237 = scmp.eq.s32.totalorder %s236, 0
      %s239 = sadd.s32 %s238, 1
      %s240 = scalar_select %p237, %s238, %s239
      %p243 = pneg %p237
      %p244 = scmp.eq.s32.totalorder %s18, 1
      %p245 = por %p243, %p244
      %p246 = scmp.ne.s32.totalorder %s238, %s241
      %p247 = scmp.eq.s32.totalorder %s18, 0
      %p248 = por %p246, %p247
      %p249 = scmp.ne.s32.totalorder %s238, %s241
      %p250 = scmp.eq.s32.totalorder %s23, 1
      %p251 = por %p249, %p250
      %p252 = scmp.ne.s32.totalorder %s241, %s242
      %p253 = scmp.eq.s32.totalorder %s23, 0
      %p254 = por %p252, %p253
      %p255 = scmp.ne.s32.totalorder %s241, %s242
      %p256 = scmp.eq.s32.totalorder %s24, 1
      %p257 = por %p255, %p256
      %p259 = scmp.ne.s32.totalorder %s242, %s258
      %p260 = scmp.eq.s32.totalorder %s24, 0
      %p261 = por %p259, %p260
      %p262 = scmp.le.s32.totalorder 1, %s18
      %p263 = scmp.lt.s32.totalorder %s18, 3
      %p264 = pnand %p262, %p263
      %p265 = pneg %p264
      // Predicated region
      $region9: #{tpu_custom_call.1} parent=5 // pred_check
        _
      $region10: #{tpu_custom_call.1} parent=5 // pred_check_branch
        %267 = sbr.rel (%p264) target = $region12
      $region11: #{tpu_custom_call.1} parent=5 // pred_region
        %s268 = ssub.s32 %s18, 1
        // Predicated region
        $region13: #{tpu_custom_call.1} parent=11 // pred_check
          %p269 = pneg %p79
        $region14: #{tpu_custom_call.1} parent=11 // pred_check_branch
          %271 = sbr.rel (%p269) target = $region16
        $region15: #{tpu_custom_call.1} parent=11 // pred_region
          _
        $region16: #{tpu_custom_call.1} parent=11 // pred_fallthru
          _
        // Predicated region
        $region17: #{tpu_custom_call.1} parent=11 // pred_check
          %p272 = pneg %p100
        $region18: #{tpu_custom_call.1} parent=11 // pred_check_branch
          %274 = sbr.rel (%p272) target = $region20
        $region19: #{tpu_custom_call.1} parent=11 // pred_region
          _
        $region20: #{tpu_custom_call.1} parent=11 // pred_fallthru
          _
        // Predicated region
        $region21: #{tpu_custom_call.1} parent=11 // pred_check
          %p275 = pneg %p121
        $region22: #{tpu_custom_call.1} parent=11 // pred_check_branch
          %277 = sbr.rel (%p275) target = $region24
        $region23: #{tpu_custom_call.1} parent=11 // pred_region
          _
        $region24: #{tpu_custom_call.1} parent=11 // pred_fallthru
          _
        // Predicated region
        $region25: #{tpu_custom_call.1} parent=11 // pred_check
          %p278 = pneg %p142
        $region26: #{tpu_custom_call.1} parent=11 // pred_check_branch
          %280 = sbr.rel (%p278) target = $region28
        $region27: #{tpu_custom_call.1} parent=11 // pred_region
          _
        $region28: #{tpu_custom_call.1} parent=11 // pred_fallthru
          _
        // Predicated region
        $region29: #{tpu_custom_call.1} parent=11 // pred_check
          %p281 = pneg %p163
        $region30: #{tpu_custom_call.1} parent=11 // pred_check_branch
          %283 = sbr.rel (%p281) target = $region32
        $region31: #{tpu_custom_call.1} parent=11 // pred_region
          _
        $region32: #{tpu_custom_call.1} parent=11 // pred_fallthru
          _
        // Predicated region
        $region33: #{tpu_custom_call.1} parent=11 // pred_check
          %p284 = pneg %p184
        $region34: #{tpu_custom_call.1} parent=11 // pred_check_branch
          %286 = sbr.rel (%p284) target = $region36
        $region35: #{tpu_custom_call.1} parent=11 // pred_region
          _
        $region36: #{tpu_custom_call.1} parent=11 // pred_fallthru
          _
        // Predicated region
        $region37: #{tpu_custom_call.1} parent=11 // pred_check
          %p287 = pneg %p205
        $region38: #{tpu_custom_call.1} parent=11 // pred_check_branch
          %289 = sbr.rel (%p287) target = $region40
        $region39: #{tpu_custom_call.1} parent=11 // pred_region
          _
        $region40: #{tpu_custom_call.1} parent=11 // pred_fallthru
          _
        // Predicated region
        $region41: #{tpu_custom_call.1} parent=11 // pred_check
          %p290 = pneg %p226
        $region42: #{tpu_custom_call.1} parent=11 // pred_check_branch
          %292 = sbr.rel (%p290) target = $region44
        $region43: #{tpu_custom_call.1} parent=11 // pred_region
          _
        $region44: #{tpu_custom_call.1} parent=11 // pred_fallthru
          _
      $region12: #{tpu_custom_call.1} parent=5 // pred_fallthru
        _
      %p293 = scmp.lt.s32.totalorder %s18, 2
      // Predicated region
      $region45: #{tpu_custom_call.1} parent=5 // pred_check
        %p294 = pneg %p293
      $region46: #{tpu_custom_call.1} parent=5 // pred_check_branch
        %296 = sbr.rel (%p294) target = $region48
      $region47: #{tpu_custom_call.1} parent=5 // pred_region
        // Predicated region
        $region49: #{tpu_custom_call.1} parent=47 // pred_check
          %p297 = pneg %p52
        $region50: #{tpu_custom_call.1} parent=47 // pred_check_branch
          %299 = sbr.rel (%p297) target = $region52
        $region51: #{tpu_custom_call.1} parent=47 // pred_region
          %s300 = smul.u32 2, %s26
          %p301 = scmp.lt.s32.totalorder %s25, 1
          %s302 = scalar_select %p301, %s25, 1
          %p303 = scmp.lt.s32.totalorder %s300, 1
          %s304 = scalar_select %p303, %s300, 1
          %s305 = smul.addr %s302, 2
          %s306 = sadd.s32 %s304, %s305
          %s307 = smul.addr %s306, 4
          %s308 = scalar_lea.vmem %s0, %s307
          %s309 = smul.u32 2, %s26
        $region52: #{tpu_custom_call.1} parent=47 // pred_fallthru
          _
      $region48: #{tpu_custom_call.1} parent=5 // pred_fallthru
        _
      %p310 = scmp.le.s32.totalorder 1, %s18
      %p311 = scmp.lt.s32.totalorder %s18, 3
      %p312 = pnand %p310, %p311
      %p313 = pneg %p312
      // Predicated region
      $region53: #{tpu_custom_call.1} parent=5 // pred_check
        _
      $region54: #{tpu_custom_call.1} parent=5 // pred_check_branch
        %315 = sbr.rel (%p312) target = $region56
      $region55: #{tpu_custom_call.1} parent=5 // pred_region
        %s316 = ssub.s32 %s18, 1
        %s317 = smul.u32 2, %s28
        %p318 = scmp.lt.s32.totalorder %s27, 1
        %s319 = scalar_select %p318, %s27, 1
        %p320 = scmp.lt.s32.totalorder %s317, 1
        %s321 = scalar_select %p320, %s317, 1
        %s322 = smul.addr %s319, 2
        %s323 = sadd.s32 %s321, %s322
        %s324 = smul.addr %s323, 4
        %s325 = scalar_lea.vmem %s0, %s324
        %p326 = pneg %p58
        %p327 = pneg %p55
        %p328 = pneg %p79
        %p329 = pneg %p76
        %p330 = pneg %p100
        %p331 = pneg %p97
        %p332 = pneg %p121
        %p333 = pneg %p118
        %p334 = pneg %p142
        %p335 = pneg %p139
        %p336 = pneg %p163
        %p337 = pneg %p160
        %p338 = pneg %p184
        %p339 = pneg %p181
        %p340 = pneg %p205
        %p341 = pneg %p202
        %p342 = pneg %p226
        %p343 = pneg %p223
        %p344 = pneg %p254
        %p345 = pneg %p251
        %s346 = sand.u32 %s241, 1
        %s347 = scalar_lea.sflag [#allocation3], %s346
        %s348 = sand.u32 %s241, 1
        %s349 = smul.addr %s348, 64
        %s350 = scalar_lea.vmem [#allocation2], %s349
        %s351 = smul.u32 2, %s28
        %p352 = scmp.lt.s32.totalorder %s27, 1
        %s353 = scalar_select %p352, %s27, 1
        %p354 = scmp.lt.s32.totalorder %s351, 1
        %s355 = scalar_select %p354, %s351, 1
        %s356 = smul.addr %s353, 2
        %s357 = sadd.s32 %s355, %s356
        %s358 = smul.addr %s357, 4
        %s359 = scalar_lea.vmem %s0, %s358
        %s360 = smul.u32 2, %s28
        %s361 = smul.u32 2, %s28
        %v362 = vld [vmem:[%s359] sm:$0xff]
        %v363 = vld [vmem:[%s1] sm:$0xff]
        %v364 = vld [vmem:[%s1 + $0x8] sm:$0xff]
        %v365 = vld [vmem:[%s1 + $0x10] sm:$0xff]
        %v366 = vld [vmem:[%s1 + $0x18] sm:$0xff]
        %v367 = vld [vmem:[%s2] sm:$0xff]
        %v368 = vld [vmem:[%s2 + $0x8] sm:$0xff]
        %v369 = vld [vmem:[%s2 + $0x10] sm:$0xff]
        %v370 = vld [vmem:[%s2 + $0x18] sm:$0xff]
        %372 = vset.pattern.permute.xlu0 0
        %373 = vperm.xlu0 %372, %v367
        %v374 = vpop.permute.xlu0 %373
        %377 = vset.pattern.permute.xlu0 0
        %378 = vperm.xlu0 %377, %v368
        %v379 = vpop.permute.xlu0 %378
        %382 = vset.pattern.permute.xlu0 0
        %383 = vperm.xlu0 %382, %v369
        %v384 = vpop.permute.xlu0 %383
        %387 = vset.pattern.permute.xlu0 0
        %388 = vperm.xlu0 %387, %v370
        %v389 = vpop.permute.xlu0 %388
        %v392 = vcombine.high %v362, %v362
        %vm393 = vcmask 31744
        %v395 = vsel %vm393, %v363, 0
        %v398 = vsel %vm393, %v364, 0
        %v401 = vsel %vm393, %v365, 0
        %v404 = vsel %vm393, %v366, 0
        %vm406 = vcmask 1043456
        %v407 = vsel %vm406, %v362, 0
        %v409 = vsel %vm406, %v392, 0
        %411 = vmatprep.subr.mxu0 0.0
        %412 = vmatpush1.msra.mxu0 0.0
        %413 = vmatprep.subr.mxu0 0.0
        %414 = vmatpush1.msra.mxu0 0.0
        %415 = vmatprep.subr.mxu0 0.0
        %416 = vmatpush1.msra.mxu0 0.0
        %417 = vmatprep.subr.mxu0 0.0
        %418 = vmatpush1.msra.mxu0 0.0
        %419 = vmatprep.subr.mxu0 0.0
        %420 = vmatpush1.msra.mxu0 0.0
        %421 = vmatprep.subr.mxu0 0.0
        %422 = vmatpush1.msra.mxu0 0.0
        %423 = vmatprep.subr.mxu0 0.0
        %424 = vmatpush1.msra.mxu0 0.0
        %425 = vmatprep.subr.mxu0 0.0
        %426 = vmatpush1.msra.mxu0 0.0
        %427 = vmatprep.subr.mxu0 0.0
        %428 = vmatpush1.msra.mxu0 0.0
        %429 = vmatprep.subr.mxu0 0.0
        %430 = vmatpush1.msra.mxu0 0.0
        %431 = vmatprep.subr.mxu0 0.0
        %432 = vmatpush1.msra.mxu0 0.0
        %433 = vmatprep.subr.mxu0 0.0
        %434 = vmatpush1.msra.mxu0 0.0
        %435 = vmatprep.subr.mxu0 0.0
        %436 = vmatpush1.msra.mxu0 0.0
        %437 = vmatprep.subr.mxu0 0.0
        %438 = vmatpush1.msra.mxu0 0.0
        %439 = vmatprep.subr.mxu0 0.0
        %440 = vmatpush1.msra.mxu0 0.0
        %441 = vmatprep.subr.mxu0 %v409
        %442 = vmatpush1.msra.mxu0 %v407
        %443 = vmatprep.subr.mxu0 0.0
        %444 = vmatpush2.msra.mxu0 0.0
        %445 = vmatprep.subr.mxu0 0.0
        %446 = vmatpush2.msra.mxu0 0.0
        %447 = vmatprep.subr.mxu0 0.0
        %448 = vmatpush2.msra.mxu0 0.0
        %449 = vmatprep.subr.mxu0 0.0
        %450 = vmatpush2.msra.mxu0 0.0
        %451 = vmatprep.subr.mxu0 0.0
        %452 = vmatpush2.msra.mxu0 0.0
        %453 = vmatprep.subr.mxu0 0.0
        %454 = vmatpush2.msra.mxu0 0.0
        %455 = vmatprep.subr.mxu0 0.0
        %456 = vmatpush2.msra.mxu0 0.0
        %457 = vmatprep.subr.mxu0 0.0
        %458 = vmatpush2.msra.mxu0 0.0
        %459 = vmatprep.subr.mxu0 0.0
        %460 = vmatpush2.msra.mxu0 0.0
        %461 = vmatprep.subr.mxu0 0.0
        %462 = vmatpush2.msra.mxu0 0.0
        %463 = vmatprep.subr.mxu0 0.0
        %464 = vmatpush2.msra.mxu0 0.0
        %465 = vmatprep.subr.mxu0 0.0
        %466 = vmatpush2.msra.mxu0 0.0
        %467 = vmatprep.subr.mxu0 0.0
        %468 = vmatpush2.msra.mxu0 0.0
        %469 = vmatprep.subr.mxu0 0.0
        %470 = vmatpush2.msra.mxu0 0.0
        %471 = vmatprep.subr.mxu0 0.0
        %472 = vmatpush2.msra.mxu0 0.0
        %473 = vmatprep.subr.mxu0 0.0
        %474 = vmatpush2.msra.mxu0 0.0
        %475 = vmatprep.mubr.f32.mxu0 0.0
        %476 = vmatmul.mubr.f32.gmra.mxu0 %v395
        %v477 = vpop.f32.mrf.mxu0
        %v478 = vadd.f32 %v374, %v477
        %v479 = vpop.f32.mrf.mxu0
        %v480 = vadd.f32 %v374, %v479
        %481 = vmatprep.mubr.f32.mxu0 0.0
        %482 = vmatmul.mubr.f32.gmra.mxu0 %v398
        %v483 = vpop.f32.mrf.mxu0
        %v484 = vadd.f32 %v379, %v483
        %v485 = vpop.f32.mrf.mxu0
        %v486 = vadd.f32 %v379, %v485
        %487 = vmatprep.mubr.f32.mxu0 0.0
        %488 = vmatmul.mubr.f32.gmra.mxu0 %v401
        %v489 = vpop.f32.mrf.mxu0
        %v490 = vadd.f32 %v384, %v489
        %v491 = vpop.f32.mrf.mxu0
        %v492 = vadd.f32 %v384, %v491
        %493 = vmatprep.mubr.f32.mxu0 0.0
        %494 = vmatmul.mubr.f32.gmra.mxu0 %v404
        %v495 = vpop.f32.mrf.mxu0
        %v496 = vadd.f32 %v389, %v495
        %v497 = vpop.f32.mrf.mxu0
        %v498 = vadd.f32 %v389, %v497
        %499 = vdwg.mxu0
        %v500 = vmax.f32 %v478, 0.0
        %v501 = vmax.f32 %v480, 0.0
        %v502 = vmax.f32 %v484, 0.0
        %v503 = vmax.f32 %v486, 0.0
        %v504 = vmax.f32 %v490, 0.0
        %v505 = vmax.f32 %v492, 0.0
        %v506 = vmax.f32 %v496, 0.0
        %v507 = vmax.f32 %v498, 0.0
        %v508 = vld [vmem:[%s3] sm:$0xff]
        %v509 = vld [vmem:[%s3 + $0x8] sm:$0xff]
        %v510 = vld [vmem:[%s3 + $0x10] sm:$0xff]
        %v511 = vld [vmem:[%s3 + $0x18] sm:$0xff]
        %v512 = vld [vmem:[%s4] sm:$0xff]
        %v513 = vld [vmem:[%s4 + $0x8] sm:$0xff]
        %v514 = vld [vmem:[%s4 + $0x10] sm:$0xff]
        %v515 = vld [vmem:[%s4 + $0x18] sm:$0xff]
        %517 = vset.pattern.permute.xlu0 0
        %518 = vperm.xlu0 %517, %v512
        %v519 = vpop.permute.xlu0 %518
        %522 = vset.pattern.permute.xlu0 0
        %523 = vperm.xlu0 %522, %v513
        %v524 = vpop.permute.xlu0 %523
        %527 = vset.pattern.permute.xlu0 0
        %528 = vperm.xlu0 %527, %v514
        %v529 = vpop.permute.xlu0 %528
        %532 = vset.pattern.permute.xlu0 0
        %533 = vperm.xlu0 %532, %v515
        %v534 = vpop.permute.xlu0 %533
        %vm536 = vcmask 261120
        %v538 = vsel %vm536, %v508, 0
        %v541 = vsel %vm536, %v509, 0
        %v544 = vsel %vm536, %v510, 0
        %v547 = vsel %vm536, %v511, 0
        %549 = vmatprep.subr.mxu0 0.0
        %550 = vmatpush1.msra.mxu0 0.0
        %551 = vmatprep.subr.mxu0 0.0
        %552 = vmatpush1.msra.mxu0 0.0
        %553 = vmatprep.subr.mxu0 0.0
        %554 = vmatpush1.msra.mxu0 0.0
        %555 = vmatprep.subr.mxu0 0.0
        %556 = vmatpush1.msra.mxu0 0.0
        %557 = vmatprep.subr.mxu0 0.0
        %558 = vmatpush1.msra.mxu0 0.0
        %559 = vmatprep.subr.mxu0 0.0
        %560 = vmatpush1.msra.mxu0 0.0
        %561 = vmatprep.subr.mxu0 0.0
        %562 = vmatpush1.msra.mxu0 0.0
        %563 = vmatprep.subr.mxu0 0.0
        %564 = vmatpush1.msra.mxu0 0.0
        %565 = vmatprep.subr.mxu0 0.0
        %566 = vmatpush1.msra.mxu0 0.0
        %567 = vmatprep.subr.mxu0 0.0
        %568 = vmatpush1.msra.mxu0 0.0
        %569 = vmatprep.subr.mxu0 0.0
        %570 = vmatpush1.msra.mxu0 0.0
        %571 = vmatprep.subr.mxu0 0.0
        %572 = vmatpush1.msra.mxu0 0.0
        %573 = vmatprep.subr.mxu0 %v507
        %574 = vmatpush1.msra.mxu0 %v506
        %575 = vmatprep.subr.mxu0 %v505
        %576 = vmatpush1.msra.mxu0 %v504
        %577 = vmatprep.subr.mxu0 %v503
        %578 = vmatpush1.msra.mxu0 %v502
        %579 = vmatprep.subr.mxu0 %v501
        %580 = vmatpush1.msra.mxu0 %v500
        %581 = vmatprep.subr.mxu0 0.0
        %582 = vmatpush2.msra.mxu0 0.0
        %583 = vmatprep.subr.mxu0 0.0
        %584 = vmatpush2.msra.mxu0 0.0
        %585 = vmatprep.subr.mxu0 0.0
        %586 = vmatpush2.msra.mxu0 0.0
        %587 = vmatprep.subr.mxu0 0.0
        %588 = vmatpush2.msra.mxu0 0.0
        %589 = vmatprep.subr.mxu0 0.0
        %590 = vmatpush2.msra.mxu0 0.0
        %591 = vmatprep.subr.mxu0 0.0
        %592 = vmatpush2.msra.mxu0 0.0
        %593 = vmatprep.subr.mxu0 0.0
        %594 = vmatpush2.msra.mxu0 0.0
        %595 = vmatprep.subr.mxu0 0.0
        %596 = vmatpush2.msra.mxu0 0.0
        %597 = vmatprep.subr.mxu0 0.0
        %598 = vmatpush2.msra.mxu0 0.0
        %599 = vmatprep.subr.mxu0 0.0
        %600 = vmatpush2.msra.mxu0 0.0
        %601 = vmatprep.subr.mxu0 0.0
        %602 = vmatpush2.msra.mxu0 0.0
        %603 = vmatprep.subr.mxu0 0.0
        %604 = vmatpush2.msra.mxu0 0.0
        %605 = vmatprep.subr.mxu0 0.0
        %606 = vmatpush2.msra.mxu0 0.0
        %607 = vmatprep.subr.mxu0 0.0
        %608 = vmatpush2.msra.mxu0 0.0
        %609 = vmatprep.subr.mxu0 0.0
        %610 = vmatpush2.msra.mxu0 0.0
        %611 = vmatprep.subr.mxu0 0.0
        %612 = vmatpush2.msra.mxu0 0.0
        %613 = vmatprep.mubr.f32.mxu0 0.0
        %614 = vmatmul.mubr.f32.gmra.mxu0 %v538
        %v615 = vpop.f32.mrf.mxu0
        %v616 = vadd.f32 %v519, %v615
        %v617 = vpop.f32.mrf.mxu0
        %v618 = vadd.f32 %v519, %v617
        %619 = vmatprep.mubr.f32.mxu0 0.0
        %620 = vmatmul.mubr.f32.gmra.mxu0 %v541
        %v621 = vpop.f32.mrf.mxu0
        %v622 = vadd.f32 %v524, %v621
        %v623 = vpop.f32.mrf.mxu0
        %v624 = vadd.f32 %v524, %v623
        %625 = vmatprep.mubr.f32.mxu0 0.0
        %626 = vmatmul.mubr.f32.gmra.mxu0 %v544
        %v627 = vpop.f32.mrf.mxu0
        %v628 = vadd.f32 %v529, %v627
        %v629 = vpop.f32.mrf.mxu0
        %v630 = vadd.f32 %v529, %v629
        %631 = vmatprep.mubr.f32.mxu0 0.0
        %632 = vmatmul.mubr.f32.gmra.mxu0 %v547
        %v633 = vpop.f32.mrf.mxu0
        %v634 = vadd.f32 %v534, %v633
        %v635 = vpop.f32.mrf.mxu0
        %v636 = vadd.f32 %v534, %v635
        %637 = vdwg.mxu0
        %v638 = vmax.f32 %v616, 0.0
        %v639 = vmax.f32 %v618, 0.0
        %v640 = vmax.f32 %v622, 0.0
        %v641 = vmax.f32 %v624, 0.0
        %v642 = vmax.f32 %v628, 0.0
        %v643 = vmax.f32 %v630, 0.0
        %v644 = vmax.f32 %v634, 0.0
        %v645 = vmax.f32 %v636, 0.0
        %v646 = vld [vmem:[%s5] sm:$0xff]
        %v647 = vld [vmem:[%s5 + $0x8] sm:$0xff]
        %v648 = vld [vmem:[%s5 + $0x10] sm:$0xff]
        %v649 = vld [vmem:[%s5 + $0x18] sm:$0xff]
        %v650 = vld [vmem:[%s6] sm:$0xff]
        %v651 = vld [vmem:[%s6 + $0x8] sm:$0xff]
        %v652 = vld [vmem:[%s6 + $0x10] sm:$0xff]
        %v653 = vld [vmem:[%s6 + $0x18] sm:$0xff]
        %655 = vset.pattern.permute.xlu0 0
        %656 = vperm.xlu0 %655, %v650
        %v657 = vpop.permute.xlu0 %656
        %660 = vset.pattern.permute.xlu0 0
        %661 = vperm.xlu0 %660, %v651
        %v662 = vpop.permute.xlu0 %661
        %665 = vset.pattern.permute.xlu0 0
        %666 = vperm.xlu0 %665, %v652
        %v667 = vpop.permute.xlu0 %666
        %670 = vset.pattern.permute.xlu0 0
        %671 = vperm.xlu0 %670, %v653
        %v672 = vpop.permute.xlu0 %671
        %v675 = vsel %vm536, %v646, 0
        %v678 = vsel %vm536, %v647, 0
        %v681 = vsel %vm536, %v648, 0
        %v684 = vsel %vm536, %v649, 0
        %686 = vmatprep.subr.mxu0 0.0
        %687 = vmatpush1.msra.mxu0 0.0
        %688 = vmatprep.subr.mxu0 0.0
        %689 = vmatpush1.msra.mxu0 0.0
        %690 = vmatprep.subr.mxu0 0.0
        %691 = vmatpush1.msra.mxu0 0.0
        %692 = vmatprep.subr.mxu0 0.0
        %693 = vmatpush1.msra.mxu0 0.0
        %694 = vmatprep.subr.mxu0 0.0
        %695 = vmatpush1.msra.mxu0 0.0
        %696 = vmatprep.subr.mxu0 0.0
        %697 = vmatpush1.msra.mxu0 0.0
        %698 = vmatprep.subr.mxu0 0.0
        %699 = vmatpush1.msra.mxu0 0.0
        %700 = vmatprep.subr.mxu0 0.0
        %701 = vmatpush1.msra.mxu0 0.0
        %702 = vmatprep.subr.mxu0 0.0
        %703 = vmatpush1.msra.mxu0 0.0
        %704 = vmatprep.subr.mxu0 0.0
        %705 = vmatpush1.msra.mxu0 0.0
        %706 = vmatprep.subr.mxu0 0.0
        %707 = vmatpush1.msra.mxu0 0.0
        %708 = vmatprep.subr.mxu0 0.0
        %709 = vmatpush1.msra.mxu0 0.0
        %710 = vmatprep.subr.mxu0 %v645
        %711 = vmatpush1.msra.mxu0 %v644
        %712 = vmatprep.subr.mxu0 %v643
        %713 = vmatpush1.msra.mxu0 %v642
        %714 = vmatprep.subr.mxu0 %v641
        %715 = vmatpush1.msra.mxu0 %v640
        %716 = vmatprep.subr.mxu0 %v639
        %717 = vmatpush1.msra.mxu0 %v638
        %718 = vmatprep.subr.mxu0 0.0
        %719 = vmatpush2.msra.mxu0 0.0
        %720 = vmatprep.subr.mxu0 0.0
        %721 = vmatpush2.msra.mxu0 0.0
        %722 = vmatprep.subr.mxu0 0.0
        %723 = vmatpush2.msra.mxu0 0.0
        %724 = vmatprep.subr.mxu0 0.0
        %725 = vmatpush2.msra.mxu0 0.0
        %726 = vmatprep.subr.mxu0 0.0
        %727 = vmatpush2.msra.mxu0 0.0
        %728 = vmatprep.subr.mxu0 0.0
        %729 = vmatpush2.msra.mxu0 0.0
        %730 = vmatprep.subr.mxu0 0.0
        %731 = vmatpush2.msra.mxu0 0.0
        %732 = vmatprep.subr.mxu0 0.0
        %733 = vmatpush2.msra.mxu0 0.0
        %734 = vmatprep.subr.mxu0 0.0
        %735 = vmatpush2.msra.mxu0 0.0
        %736 = vmatprep.subr.mxu0 0.0
        %737 = vmatpush2.msra.mxu0 0.0
        %738 = vmatprep.subr.mxu0 0.0
        %739 = vmatpush2.msra.mxu0 0.0
        %740 = vmatprep.subr.mxu0 0.0
        %741 = vmatpush2.msra.mxu0 0.0
        %742 = vmatprep.subr.mxu0 0.0
        %743 = vmatpush2.msra.mxu0 0.0
        %744 = vmatprep.subr.mxu0 0.0
        %745 = vmatpush2.msra.mxu0 0.0
        %746 = vmatprep.subr.mxu0 0.0
        %747 = vmatpush2.msra.mxu0 0.0
        %748 = vmatprep.subr.mxu0 0.0
        %749 = vmatpush2.msra.mxu0 0.0
        %750 = vmatprep.mubr.f32.mxu0 0.0
        %751 = vmatmul.mubr.f32.gmra.mxu0 %v675
        %v752 = vpop.f32.mrf.mxu0
        %v753 = vadd.f32 %v657, %v752
        %v754 = vpop.f32.mrf.mxu0
        %v755 = vadd.f32 %v657, %v754
        %756 = vmatprep.mubr.f32.mxu0 0.0
        %757 = vmatmul.mubr.f32.gmra.mxu0 %v678
        %v758 = vpop.f32.mrf.mxu0
        %v759 = vadd.f32 %v662, %v758
        %v760 = vpop.f32.mrf.mxu0
        %v761 = vadd.f32 %v662, %v760
        %762 = vmatprep.mubr.f32.mxu0 0.0
        %763 = vmatmul.mubr.f32.gmra.mxu0 %v681
        %v764 = vpop.f32.mrf.mxu0
        %v765 = vadd.f32 %v667, %v764
        %v766 = vpop.f32.mrf.mxu0
        %v767 = vadd.f32 %v667, %v766
        %768 = vmatprep.mubr.f32.mxu0 0.0
        %769 = vmatmul.mubr.f32.gmra.mxu0 %v684
        %v770 = vpop.f32.mrf.mxu0
        %v771 = vadd.f32 %v672, %v770
        %v772 = vpop.f32.mrf.mxu0
        %v773 = vadd.f32 %v672, %v772
        %774 = vdwg.mxu0
        %v775 = vmax.f32 %v753, 0.0
        %v776 = vmax.f32 %v755, 0.0
        %v777 = vmax.f32 %v759, 0.0
        %v778 = vmax.f32 %v761, 0.0
        %v779 = vmax.f32 %v765, 0.0
        %v780 = vmax.f32 %v767, 0.0
        %v781 = vmax.f32 %v771, 0.0
        %v782 = vmax.f32 %v773, 0.0
        %v783 = vld [vmem:[%s7] sm:$0xff]
        %v784 = vld [vmem:[%s7 + $0x8] sm:$0xff]
        %v785 = vld [vmem:[%s7 + $0x10] sm:$0xff]
        %v786 = vld [vmem:[%s7 + $0x18] sm:$0xff]
        %v787 = vld [vmem:[%s8] sm:$0xff]
        %v788 = vld [vmem:[%s8 + $0x8] sm:$0xff]
        %v789 = vld [vmem:[%s8 + $0x10] sm:$0xff]
        %v790 = vld [vmem:[%s8 + $0x18] sm:$0xff]
        %792 = vset.pattern.permute.xlu0 0
        %793 = vperm.xlu0 %792, %v787
        %v794 = vpop.permute.xlu0 %793
        %797 = vset.pattern.permute.xlu0 0
        %798 = vperm.xlu0 %797, %v788
        %v799 = vpop.permute.xlu0 %798
        %802 = vset.pattern.permute.xlu0 0
        %803 = vperm.xlu0 %802, %v789
        %v804 = vpop.permute.xlu0 %803
        %807 = vset.pattern.permute.xlu0 0
        %808 = vperm.xlu0 %807, %v790
        %v809 = vpop.permute.xlu0 %808
        %v812 = vsel %vm536, %v783, 0
        %v815 = vsel %vm536, %v784, 0
        %v818 = vsel %vm536, %v785, 0
        %v821 = vsel %vm536, %v786, 0
        %823 = vmatprep.subr.mxu0 0.0
        %824 = vmatpush1.msra.mxu0 0.0
        %825 = vmatprep.subr.mxu0 0.0
        %826 = vmatpush1.msra.mxu0 0.0
        %827 = vmatprep.subr.mxu0 0.0
        %828 = vmatpush1.msra.mxu0 0.0
        %829 = vmatprep.subr.mxu0 0.0
        %830 = vmatpush1.msra.mxu0 0.0
        %831 = vmatprep.subr.mxu0 0.0
        %832 = vmatpush1.msra.mxu0 0.0
        %833 = vmatprep.subr.mxu0 0.0
        %834 = vmatpush1.msra.mxu0 0.0
        %835 = vmatprep.subr.mxu0 0.0
        %836 = vmatpush1.msra.mxu0 0.0
        %837 = vmatprep.subr.mxu0 0.0
        %838 = vmatpush1.msra.mxu0 0.0
        %839 = vmatprep.subr.mxu0 0.0
        %840 = vmatpush1.msra.mxu0 0.0
        %841 = vmatprep.subr.mxu0 0.0
        %842 = vmatpush1.msra.mxu0 0.0
        %843 = vmatprep.subr.mxu0 0.0
        %844 = vmatpush1.msra.mxu0 0.0
        %845 = vmatprep.subr.mxu0 0.0
        %846 = vmatpush1.msra.mxu0 0.0
        %847 = vmatprep.subr.mxu0 %v782
        %848 = vmatpush1.msra.mxu0 %v781
        %849 = vmatprep.subr.mxu0 %v780
        %850 = vmatpush1.msra.mxu0 %v779
        %851 = vmatprep.subr.mxu0 %v778
        %852 = vmatpush1.msra.mxu0 %v777
        %853 = vmatprep.subr.mxu0 %v776
        %854 = vmatpush1.msra.mxu0 %v775
        %855 = vmatprep.subr.mxu0 0.0
        %856 = vmatpush2.msra.mxu0 0.0
        %857 = vmatprep.subr.mxu0 0.0
        %858 = vmatpush2.msra.mxu0 0.0
        %859 = vmatprep.subr.mxu0 0.0
        %860 = vmatpush2.msra.mxu0 0.0
        %861 = vmatprep.subr.mxu0 0.0
        %862 = vmatpush2.msra.mxu0 0.0
        %863 = vmatprep.subr.mxu0 0.0
        %864 = vmatpush2.msra.mxu0 0.0
        %865 = vmatprep.subr.mxu0 0.0
        %866 = vmatpush2.msra.mxu0 0.0
        %867 = vmatprep.subr.mxu0 0.0
        %868 = vmatpush2.msra.mxu0 0.0
        %869 = vmatprep.subr.mxu0 0.0
        %870 = vmatpush2.msra.mxu0 0.0
        %871 = vmatprep.subr.mxu0 0.0
        %872 = vmatpush2.msra.mxu0 0.0
        %873 = vmatprep.subr.mxu0 0.0
        %874 = vmatpush2.msra.mxu0 0.0
        %875 = vmatprep.subr.mxu0 0.0
        %876 = vmatpush2.msra.mxu0 0.0
        %877 = vmatprep.subr.mxu0 0.0
        %878 = vmatpush2.msra.mxu0 0.0
        %879 = vmatprep.subr.mxu0 0.0
        %880 = vmatpush2.msra.mxu0 0.0
        %881 = vmatprep.subr.mxu0 0.0
        %882 = vmatpush2.msra.mxu0 0.0
        %883 = vmatprep.subr.mxu0 0.0
        %884 = vmatpush2.msra.mxu0 0.0
        %885 = vmatprep.subr.mxu0 0.0
        %886 = vmatpush2.msra.mxu0 0.0
        %887 = vmatprep.mubr.f32.mxu0 0.0
        %888 = vmatmul.mubr.f32.gmra.mxu0 %v812
        %v889 = vpop.f32.mrf.mxu0
        %v890 = vadd.f32 %v794, %v889
        %v891 = vpop.f32.mrf.mxu0
        %v892 = vadd.f32 %v794, %v891
        %893 = vmatprep.mubr.f32.mxu0 0.0
        %894 = vmatmul.mubr.f32.gmra.mxu0 %v815
        %v895 = vpop.f32.mrf.mxu0
        %v896 = vadd.f32 %v799, %v895
        %v897 = vpop.f32.mrf.mxu0
        %v898 = vadd.f32 %v799, %v897
        %899 = vmatprep.mubr.f32.mxu0 0.0
        %900 = vmatmul.mubr.f32.gmra.mxu0 %v818
        %v901 = vpop.f32.mrf.mxu0
        %v902 = vadd.f32 %v804, %v901
        %v903 = vpop.f32.mrf.mxu0
        %v904 = vadd.f32 %v804, %v903
        %905 = vmatprep.mubr.f32.mxu0 0.0
        %906 = vmatmul.mubr.f32.gmra.mxu0 %v821
        %v907 = vpop.f32.mrf.mxu0
        %v908 = vadd.f32 %v809, %v907
        %v909 = vpop.f32.mrf.mxu0
        %v910 = vadd.f32 %v809, %v909
        %911 = vdwg.mxu0
        %v912 = vmax.f32 %v890, 0.0
        %v913 = vmax.f32 %v892, 0.0
        %v914 = vmax.f32 %v896, 0.0
        %v915 = vmax.f32 %v898, 0.0
        %v916 = vmax.f32 %v902, 0.0
        %v917 = vmax.f32 %v904, 0.0
        %v918 = vmax.f32 %v908, 0.0
        %v919 = vmax.f32 %v910, 0.0
        %920 = vst [vmem:[%s350] sm:$0xff] %v912
        %921 = vst [vmem:[%s350 + $0x8] sm:$0xff] %v913
        %922 = vst [vmem:[%s350 + $0x10] sm:$0xff] %v914
        %923 = vst [vmem:[%s350 + $0x18] sm:$0xff] %v915
        %924 = vst [vmem:[%s350 + $0x20] sm:$0xff] %v916
        %925 = vst [vmem:[%s350 + $0x28] sm:$0xff] %v917
        %926 = vst [vmem:[%s350 + $0x30] sm:$0xff] %v918
        %927 = vst [vmem:[%s350 + $0x38] sm:$0xff] %v919
        %s928 = sand.u32 %s241, 1
        %s929 = scalar_lea.sflag [#allocation3], %s928
        %s930 = sand.u32 %s241, 1
        %s931 = smul.addr %s930, 64
        %s932 = scalar_lea.vmem [#allocation2], %s931
        // Predicated region
        $region57: #{tpu_custom_call.1} parent=55 // pred_check
          %p933 = pneg %p251
        $region58: #{tpu_custom_call.1} parent=55 // pred_check_branch
          %935 = sbr.rel (%p933) target = $region60
        $region59: #{tpu_custom_call.1} parent=55 // pred_region
          %s936 = smul.u32 2, %s28
          %s938 = ssub.s32 1024, 1024
          %939 = vsyncadd %s929, %s938
          %s940 = smul.addr %s27, 8
          %s941 = sadd.s32 %s936, %s940
          %s942 = smul.addr %s941, 128
          %s943 = scalar_lea.hbm %s9, %s942
          %s944 = sshll.u32 %s932, 4
          %s945 = int_to_ptr.vmem [resolvable:$true] %s944
          %950 = dma.vmem_to_hbm [thread:$0]  %s945, 1024, %s943, %s929, 256, 256, 16
        $region60: #{tpu_custom_call.1} parent=55 // pred_fallthru
          _
      $region56: #{tpu_custom_call.1} parent=5 // pred_fallthru
        _
      %p951 = scmp.le.s32.totalorder 2, %s18
      // Predicated region
      $region61: #{tpu_custom_call.1} parent=5 // pred_check
        %p952 = pneg %p951
      $region62: #{tpu_custom_call.1} parent=5 // pred_check_branch
        %954 = sbr.rel (%p952) target = $region64
      $region63: #{tpu_custom_call.1} parent=5 // pred_region
        %s955 = ssub.s32 %s18, 2
        // Predicated region
        $region65: #{tpu_custom_call.1} parent=63 // pred_check
          %p956 = pneg %p257
        $region66: #{tpu_custom_call.1} parent=63 // pred_check_branch
          %958 = sbr.rel (%p956) target = $region68
        $region67: #{tpu_custom_call.1} parent=63 // pred_region
          %s959 = sand.u32 %s242, 1
          %s960 = scalar_lea.sflag [#allocation3], %s959
          %s961 = sand.u32 %s242, 1
          %s962 = smul.addr %s961, 64
          %s963 = scalar_lea.vmem [#allocation2], %s962
          %964 = dma.done %s960, 1024
        $region68: #{tpu_custom_call.1} parent=63 // pred_fallthru
          _
      $region64: #{tpu_custom_call.1} parent=5 // pred_fallthru
        _
    $region6: #{tpu_custom_call.1} parent=1 // loop_footer
      %s22 = sadd.s32 1, %s18
    $region7: #{tpu_custom_call.1} parent=1 // loop_footer_branch
      %17 = sbr.rel target = $region3
    $region8: #{tpu_custom_call.1} parent=1 // loop_exit
      _
    %965 = vsyncpa [#allocation3], 1
    %s966 = scalar_lea.sflag [#allocation3], 1
    %967 = vsyncpa %s966, 1

</llo_original>
